<compile_context>
chip_gen: v6e
topology: v6e:2x2x1
jax: 0.10.0
libtpu: 0.0.40
codegen_flags: <defaults>
</compile_context>

<pallas_src>
import functools

import jax
import jax.numpy as jnp
from jax.experimental import pallas as pl
from jax.experimental.pallas import tpu as pltpu

EPS = 1e-5
_VMEM_TILE_BUDGET = 20 * 1024 * 1024   # target tile footprint incl. double-buffering
_VMEM_LIMIT = 32 * 1024 * 1024         # scoped VMEM limit; safe on v5e/v6e/v7x


def _round_up(n, m):
    return ((n + m - 1) // m) * m


def _choose_block_rows(R, D, n_buffers, itemsize=4, max_rows=2048):
    """Largest row tile whose double-buffered footprint fits the VMEM budget."""
    bytes_per_row = max(1, n_buffers * 2 * D * itemsize)   # *2 : double buffering
    rows = _VMEM_TILE_BUDGET // bytes_per_row
    rows = max(8, min(max_rows, rows))
    rows -= rows % 8
    rows = min(rows, _round_up(R, 8))
    return max(8, rows)


# ----------------------------- ScaleNorm kernel -----------------------------
def _scalenorm_kernel(x_ref, g_ref, o_ref):
    x = x_ref[...].astype(jnp.float32)
    ss = jnp.sum(x * x, axis=-1, keepdims=True)           # reduction over embed dim
    # max(sqrt(ss), eps) == sqrt(max(ss, eps^2)); rsqrt issues on the EUP slot.
    inv = g_ref[0, 0] * jax.lax.rsqrt(jnp.maximum(ss, EPS * EPS))
    o_ref[...] = (x * inv).astype(o_ref.dtype)


def scale_norm(x2d, g):
    R, D = x2d.shape
    block_rows = _choose_block_rows(R, D, n_buffers=2)      # x in + out
    Rp = _round_up(R, block_rows)
    xp = jnp.pad(x2d, ((0, Rp - R), (0, 0))) if Rp != R else x2d

    big_spec = pl.BlockSpec((block_rows, D), lambda i: (i, 0))
    out = pl.pallas_call(
        _scalenorm_kernel,
        out_shape=jax.ShapeDtypeStruct((Rp, D), x2d.dtype),
        grid=(Rp // block_rows,),
        in_specs=[big_spec, pl.BlockSpec((1, 1), lambda i: (0, 0))],
        out_specs=big_spec,
        compiler_params=pltpu.CompilerParams(
            dimension_semantics=("parallel",),
            vmem_limit_bytes=_VMEM_LIMIT),
    )(xp, g)
    return out[:R] if Rp != R else out


# ----------------------- residual (+ dropout) kernels ------------------------
def _residual_add_kernel(x_ref, y_ref, o_ref):
    o_ref[...] = x_ref[...] + y_ref[...].astype(o_ref.dtype)


def _residual_dropout_kernel(x_ref, y_ref, u_ref, o_ref, *, keep_prob):
    y = y_ref[...]
    scale = jnp.asarray(1.0 / keep_prob, y.dtype)
    keep = u_ref[...] < jnp.float32(keep_prob)              # inverted dropout mask
    y = jnp.where(keep, y * scale, jnp.zeros_like(y))
    o_ref[...] = x_ref[...] + y


def residual_dropout(x2d, y2d, *, dropout_p, rng_key, training):
    R, D = x2d.shape
    apply_dropout = bool(training) and float(dropout_p) > 0.0
    n_buffers = 4 if apply_dropout else 3                    # x, y, (u), out
    block_rows = _choose_block_rows(R, D, n_buffers=n_buffers)
    Rp = _round_up(R, block_rows)

    def _pad(a):
        return jnp.pad(a, ((0, Rp - R), (0, 0))) if Rp != R else a

    big_spec = pl.BlockSpec((block_rows, D), lambda i: (i, 0))
    inputs = [_pad(x2d), _pad(y2d)]
    in_specs = [big_spec, big_spec]
    if apply_dropout:
        assert rng_key is not None, "rng_key required when training with dropout_p > 0"
        u = jax.random.uniform(rng_key, (R, D), dtype=jnp.float32)
        inputs.append(_pad(u))
        in_specs.append(big_spec)
        kernel = functools.partial(_residual_dropout_kernel,
                                   keep_prob=1.0 - float(dropout_p))
    else:
        kernel = _residual_add_kernel

    out = pl.pallas_call(
        kernel,
        out_shape=jax.ShapeDtypeStruct((Rp, D), x2d.dtype),
        grid=(Rp // block_rows,),
        in_specs=in_specs,
        out_specs=big_spec,
        # x is dead after this call in sublayer_connection, so reuse its buffer.
        input_output_aliases={0: 0},
        compiler_params=pltpu.CompilerParams(
            dimension_semantics=("parallel",),
            vmem_limit_bytes=_VMEM_LIMIT),
    )(*inputs)
    return out[:R] if Rp != R else out


# ----------------------------- module wrapper --------------------------------
def sublayer_connection(x, sublayer, g, *, dropout_p, rng_key=None, training=True):
    """x: (B, S, D); sublayer: callable (B, S, D) -> (B, S, D); g: (1, 1) ScaleNorm param."""
    B, S, D = x.shape
    x2d = x.reshape(B * S, D)
    normed = scale_norm(x2d, g)                               # Pallas kernel 1
    y = sublayer(normed.reshape(B, S, D)).reshape(B * S, D)   # opaque user callable (plain JAX)
    # TODO(synk): when the sublayer is a known linear layer, fuse ScaleNorm as a
    # matmul prologue and dropout+residual as its epilogue in one Pallas kernel
    # to remove two HBM round trips; kept separate since the module treats the
    # sublayer as an arbitrary Callable.
    out = residual_dropout(x2d, y, dropout_p=dropout_p,
                           rng_key=rng_key, training=training)  # Pallas kernel 2
    return out.reshape(B, S, D)


if __name__ == "__main__":
    key = jax.random.PRNGKey(0)
    B, S, D = 2, 8, 128               # batch, seq, embed_dim
    kx, kw, kb, kd = jax.random.split(key, 4)

    x = jax.random.normal(kx, (B, S, D), dtype=jnp.float32)
    # ScaleNorm's single parameter, init = embed_dim ** 0.5 (as in __init__).
    g = jnp.full((1, 1), D ** 0.5, dtype=jnp.float32)
    # Deterministic example sublayer (a small linear layer).
    W = jax.random.normal(kw, (D, D), dtype=jnp.float32) / jnp.sqrt(jnp.float32(D))
    b = 0.01 * jax.random.normal(kb, (D,), dtype=jnp.float32)

    def make_sublayer(W, b):
        return lambda t: jnp.dot(t, W) + b

    # Eval path (dropout disabled) — check against a pure-JAX reference.
    eval_fwd = jax.jit(lambda x, g, W, b: sublayer_connection(
        x, make_sublayer(W, b), g, dropout_p=0.1, training=False))
    out_eval = jax.block_until_ready(eval_fwd(x, g, W, b))

    def reference(x, g, W, b):
        n = jnp.maximum(jnp.sqrt(jnp.sum(x * x, axis=-1, keepdims=True)), EPS)
        normed = x * (g[0, 0] / n)
        return x + (jnp.dot(normed, W) + b)

    ref = reference(x, g, W, b)
    assert out_eval.shape == (B, S, D) and out_eval.dtype == jnp.float32
    assert jnp.allclose(out_eval, ref, rtol=1e-4, atol=1e-4), \
        float(jnp.max(jnp.abs(out_eval - ref)))

    # Training path (dropout active).
    train_fwd = jax.jit(lambda x, g, W, b, k: sublayer_connection(
        x, make_sublayer(W, b), g, dropout_p=0.1, rng_key=k, training=True))
    out_train = jax.block_until_ready(train_fwd(x, g, W, b, kd))
    assert out_train.shape == (B, S, D) and out_train.dtype == jnp.float32

    print("KERNEL_OK")
</pallas_src>

<mosaic_0001>
module attributes {stable_mosaic.version = 11 : i64} {
  func.func @_residual_add_kernel(%arg0: i32, %arg1: memref<16x128xf32, #tpu.memory_space<vmem>>, %arg2: memref<16x128xf32, #tpu.memory_space<vmem>>, %arg3: memref<16x128xf32, #tpu.memory_space<vmem>>) attributes {dimension_semantics = [#tpu.dimension_semantics<parallel>], iteration_bounds = array<i64: 1>, scalar_prefetch = 0 : i64, scratch_operands = 0 : i64, tpu.core_type = #tpu.core_type<tc>, window_params = [{transform_indices = @transform_0, window_bounds = array<i64: 16, 128>}, {transform_indices = @transform_1, window_bounds = array<i64: 16, 128>}, {transform_indices = @transform_2, window_bounds = array<i64: 16, 128>}]} {
    %c0 = arith.constant 0 : index
    %c0_0 = arith.constant 0 : index
    %0 = vector.load %arg1[%c0, %c0_0] : memref<16x128xf32, #tpu.memory_space<vmem>>, vector<16x128xf32>
    %c0_1 = arith.constant 0 : index
    %c0_2 = arith.constant 0 : index
    %1 = vector.load %arg2[%c0_1, %c0_2] : memref<16x128xf32, #tpu.memory_space<vmem>>, vector<16x128xf32>
    %2 = arith.addf %0, %1 : vector<16x128xf32>
    %c0_3 = arith.constant 0 : index
    %c0_4 = arith.constant 0 : index
    %3 = vector.load %arg3[%c0_3, %c0_4] : memref<16x128xf32, #tpu.memory_space<vmem>>, vector<16x128xf32>
    tpu.vector_store %arg3[%c0_3, %c0_4], %2 {strides = array<i32>} : memref<16x128xf32, #tpu.memory_space<vmem>>, vector<16x128xf32>,
    return
  }
  func.func @transform_0(%arg0: i32) -> (i32, i32) {
    %c0_i32 = arith.constant 0 : i32
    %c0_i32_0 = arith.constant 0 : i32
    return %arg0, %c0_i32 : i32, i32
  }
  func.func @transform_1(%arg0: i32) -> (i32, i32) {
    %c0_i32 = arith.constant 0 : i32
    %c0_i32_0 = arith.constant 0 : i32
    return %arg0, %c0_i32 : i32, i32
  }
  func.func @transform_2(%arg0: i32) -> (i32, i32) {
    %c0_i32 = arith.constant 0 : i32
    %c0_i32_0 = arith.constant 0 : i32
    return %arg0, %c0_i32 : i32, i32
  }
}

module attributes {stable_mosaic.version = 11 : i64} {
  func.func @_scalenorm_kernel(%arg0: i32, %arg1: memref<16x128xf32, #tpu.memory_space<vmem>>, %arg2: memref<1x1xf32, #tpu.memory_space<vmem>>, %arg3: memref<16x128xf32, #tpu.memory_space<vmem>>) attributes {dimension_semantics = [#tpu.dimension_semantics<parallel>], iteration_bounds = array<i64: 1>, scalar_prefetch = 0 : i64, scratch_operands = 0 : i64, tpu.core_type = #tpu.core_type<tc>, window_params = [{transform_indices = @transform_0, window_bounds = array<i64: 16, 128>}, {pipeline_mode = #tpu.pipeline_mode<synchronous>, transform_indices = @transform_1, window_bounds = array<i64: 1, 1>}, {transform_indices = @transform_2, window_bounds = array<i64: 16, 128>}]} {
    %c0 = arith.constant 0 : index
    %c0_0 = arith.constant 0 : index
    %0 = vector.load %arg1[%c0, %c0_0] : memref<16x128xf32, #tpu.memory_space<vmem>>, vector<16x128xf32>
    %1 = arith.mulf %0, %0 : vector<16x128xf32>
    %cst = arith.constant dense<0.000000e+00> : vector<16xf32>
    %2 = vector.multi_reduction <add>, %1, %cst [1] : vector<16x128xf32> to vector<16xf32>
    %3 = vector.shape_cast %2 : vector<16xf32> to vector<16x1xf32>
    %c0_1 = arith.constant 0 : index
    %c0_2 = arith.constant 0 : index
    %4 = vector.load %arg2[%c0_1, %c0_2] : memref<1x1xf32, #tpu.memory_space<vmem>>, vector<1x1xf32>
    %5 = vector.extract %4[0, 0] : f32 from vector<1x1xf32>
    %cst_3 = arith.constant 1.000000e-10 : f32
    %6 = vector.broadcast %cst_3 : f32 to vector<16x1xf32>
    %7 = arith.maximumf %3, %6 : vector<16x1xf32>
    %8 = math.rsqrt %7 : vector<16x1xf32>
    %9 = vector.broadcast %5 : f32 to vector<16x1xf32>
    %10 = arith.mulf %9, %8 : vector<16x1xf32>
    %11 = vector.broadcast %10 : vector<16x1xf32> to vector<16x128xf32>
    %12 = arith.mulf %0, %11 : vector<16x128xf32>
    %c0_4 = arith.constant 0 : index
    %c0_5 = arith.constant 0 : index
    %13 = vector.load %arg3[%c0_4, %c0_5] : memref<16x128xf32, #tpu.memory_space<vmem>>, vector<16x128xf32>
    tpu.vector_store %arg3[%c0_4, %c0_5], %12 {strides = array<i32>} : memref<16x128xf32, #tpu.memory_space<vmem>>, vector<16x128xf32>,
    return
  }
  func.func @transform_0(%arg0: i32) -> (i32, i32) {
    %c0_i32 = arith.constant 0 : i32
    %c0_i32_0 = arith.constant 0 : i32
    return %arg0, %c0_i32 : i32, i32
  }
  func.func @transform_1(%arg0: i32) -> (i32, i32) {
    %c0_i32 = arith.constant 0 : i32
    %c0_i32_0 = arith.constant 0 : i32
    %c0_i32_1 = arith.constant 0 : i32
    return %c0_i32, %c0_i32_0 : i32, i32
  }
  func.func @transform_2(%arg0: i32) -> (i32, i32) {
    %c0_i32 = arith.constant 0 : i32
    %c0_i32_0 = arith.constant 0 : i32
    return %arg0, %c0_i32 : i32, i32
  }
}

</mosaic_0001>

<llo_original>
// kernel: _lambda_.3
$region0: #{_lambda_.3}
  #allocation0 [shape = 'u32[]', space=smem, size = 0x4, offset = 0x4, fixed_abs, tag = 'smem constant byte address 0x4 - core index']
  #allocation1 [shape = 'u32[144,128]{1,0:T(1,128)}', space=vmem, size = 0x12000, scoped, tag = 'internal scratch']
  %s0 = inlined_call_operand.vmem [shape: f32[16,128], index: 0, kind: input, shape index: {}, may-alias: {0,2}]
  %s1 = inlined_call_operand.vmem [shape: f32[16,128], index: 1, kind: input, shape index: {}]
  %s2 = inlined_call_operand.vmem [shape: f32[16,128], index: 2, kind: output, shape index: {}, may-alias: {0,2}]
  %s3 = sld [smem:[#allocation0]]
  $region18: #{_lambda_.3} parent=0
    _
  %s5 = ssub.s32 1, %s3
  %s6 = scalar_select 0, %s5, %s3
  // Predicated region
  $region2: #{_lambda_.3} parent=0 // pred_check
    _
  $region3: #{_lambda_.3} parent=0 // pred_check_branch
    %8 = sbr.rel (0) target = $region5
  $region4: #{_lambda_.3} parent=0 // pred_region
    _
  $region5: #{_lambda_.3} parent=0 // pred_fallthru
    _
  // Predicated region
  $region6: #{_lambda_.3} parent=0 // pred_check
    _
  $region7: #{_lambda_.3} parent=0 // pred_check_branch
    %10 = sbr.rel (0) target = $region9
  $region8: #{_lambda_.3} parent=0 // pred_region
    _
  $region9: #{_lambda_.3} parent=0 // pred_fallthru
    _
  %v11 = vld [vmem:[%s0] sm:$0xff]
  %v12 = vld [vmem:[%s0 + $0x8] sm:$0xff]
  %v13 = vld [vmem:[%s1] sm:$0xff]
  %v14 = vld [vmem:[%s1 + $0x8] sm:$0xff]
  %v15 = vadd.f32 %v11, %v13
  %v16 = vadd.f32 %v12, %v14
  %17 = vst [vmem:[%s2] sm:$0xff] %v15
  %18 = vst [vmem:[%s2 + $0x8] sm:$0xff] %v16
  // Predicated region
  $region10: #{_lambda_.3} parent=0 // pred_check
    _
  $region11: #{_lambda_.3} parent=0 // pred_check_branch
    %20 = sbr.rel (0) target = $region13
  $region12: #{_lambda_.3} parent=0 // pred_region
    _
  $region13: #{_lambda_.3} parent=0 // pred_fallthru
    _
  // Predicated region
  $region14: #{_lambda_.3} parent=0 // pred_check
    _
  $region15: #{_lambda_.3} parent=0 // pred_check_branch
    %22 = sbr.rel (0) target = $region17
  $region16: #{_lambda_.3} parent=0 // pred_region
    _
  $region17: #{_lambda_.3} parent=0 // pred_fallthru
    _

// kernel: _lambda_.2
$region0: #{_lambda_.2}
  #allocation0 [shape = 'u32[]', space=smem, size = 0x4, offset = 0x4, fixed_abs, tag = 'smem constant byte address 0x4 - core index']
  #allocation1 [shape = 'u32[144,128]{1,0:T(1,128)}', space=vmem, size = 0x12000, scoped, tag = 'internal scratch']
  #allocation2 [shape = 'f32[1,1]{1,0:T(1,128)S(1)}', space=vmem, size = 0x200, scoped, tag = 'scoped memory for _lambda_.2']
  %s0 = inlined_call_operand.vmem [shape: f32[16,128], index: 0, kind: input, shape index: {}]
  %s1 = inlined_call_operand.<no memory space> [shape: f32[1,1], index: 1, kind: input, shape index: {}]
  %s2 = inlined_call_operand.vmem [shape: f32[16,128], index: 2, kind: output, shape index: {}]
  %s3 = sld [smem:[#allocation0]]
  $region18: #{_lambda_.2} parent=0
    _
  %s5 = ssub.s32 1, %s3
  %s6 = scalar_select 0, %s5, %s3
  %v7 = vstv %s1
  %8 = vst [vmem:[#allocation2] sm:$0x1] %v7
  // Predicated region
  $region2: #{_lambda_.2} parent=0 // pred_check
    _
  $region3: #{_lambda_.2} parent=0 // pred_check_branch
    %10 = sbr.rel (0) target = $region5
  $region4: #{_lambda_.2} parent=0 // pred_region
    _
  $region5: #{_lambda_.2} parent=0 // pred_fallthru
    _
  // Predicated region
  $region6: #{_lambda_.2} parent=0 // pred_check
    _
  $region7: #{_lambda_.2} parent=0 // pred_check_branch
    %12 = sbr.rel (0) target = $region9
  $region8: #{_lambda_.2} parent=0 // pred_region
    _
  $region9: #{_lambda_.2} parent=0 // pred_fallthru
    _
  %v13 = vld [vmem:[%s0] sm:$0xff]
  %v14 = vld [vmem:[%s0 + $0x8] sm:$0xff]
  %v15 = vmul.f32 %v13, %v13
  %v16 = vmul.f32 %v14, %v14
  %17 = vadd.xlane.f32.xlu0 %v15
  %v18 = vpop.xlane.xlu0 %17
  %19 = vadd.xlane.f32.xlu0 %v16
  %v20 = vpop.xlane.xlu0 %19
  %v21 = vld [vmem:[#allocation2] sm:$0x1]
  %s22 = vtos %v21
  %v23 = vmax.f32 %v18, 1e-10
  %v24 = vmax.f32 %v20, 1e-10
  %v25 = vrsqrt.pop %v23
  %v26 = vrsqrt.pop %v24
  %v27 = vstv %s22
  %v28 = vmul.f32 %v27, %v25
  %v29 = vmul.f32 %v27, %v26
  %v30 = vmul.f32 %v13, %v28
  %v31 = vmul.f32 %v14, %v29
  %32 = vst [vmem:[%s2] sm:$0xff] %v30
  %33 = vst [vmem:[%s2 + $0x8] sm:$0xff] %v31
  // Predicated region
  $region10: #{_lambda_.2} parent=0 // pred_check
    _
  $region11: #{_lambda_.2} parent=0 // pred_check_branch
    %35 = sbr.rel (0) target = $region13
  $region12: #{_lambda_.2} parent=0 // pred_region
    _
  $region13: #{_lambda_.2} parent=0 // pred_fallthru
    _
  // Predicated region
  $region14: #{_lambda_.2} parent=0 // pred_check
    _
  $region15: #{_lambda_.2} parent=0 // pred_check_branch
    %37 = sbr.rel (0) target = $region17
  $region16: #{_lambda_.2} parent=0 // pred_region
    _
  $region17: #{_lambda_.2} parent=0 // pred_fallthru
    _

</llo_original>
